<compile_context>
chip_gen: v7x
topology: tpu7x:2x2x1
jax: 0.10.0
libtpu: 0.0.40
codegen_flags: <defaults>
</compile_context>

<pallas_src>
import functools

import jax
import jax.numpy as jnp
from jax.experimental import pallas as pl
from jax.experimental.pallas import tpu as pltpu

LANE = 128
SUBLANE = 8


def _round_up(x, m):
    return ((x + m - 1) // m) * m


def _mlp_kernel(x_ref,
                w1_ref, b1_ref,
                w2_ref, b2_ref,
                w3_ref, b3_ref,
                w4_ref, b4_ref,
                o_ref):
    """Whole fused forward pass for one tile of nodes (all lane-dense)."""
    x = x_ref[...]

    h = jnp.dot(x, w1_ref[...], preferred_element_type=jnp.float32) + b1_ref[...]
    h = jnp.maximum(h, 0.0)

    h = jnp.dot(h, w2_ref[...], preferred_element_type=jnp.float32) + b2_ref[...]
    h = jnp.maximum(h, 0.0)

    h = jnp.dot(h, w3_ref[...], preferred_element_type=jnp.float32) + b3_ref[...]
    h = jnp.maximum(h, 0.0)

    out = jnp.dot(h, w4_ref[...], preferred_element_type=jnp.float32) + b4_ref[...]
    o_ref[...] = out.astype(o_ref.dtype)


def pad_params(params):
    """Zero-pad every layer's in/out feature dims to multiples of 128 lanes.

    Zero rows of W contribute nothing to x_pad @ W, zero cols + zero bias stay
    zero through ReLU, so results in the original columns are bit-identical.
    Call once; reuse the padded params for every forward pass.
    """
    padded = []
    for w, b in params:
        fi, fo = w.shape
        fi_p, fo_p = _round_up(fi, LANE), _round_up(fo, LANE)
        w_p = jnp.pad(w, ((0, fi_p - fi), (0, fo_p - fo)))
        b_p = jnp.pad(b, ((0, 0), (0, fo_p - fo)))
        padded.append((w_p, b_p))
    return padded


def node_classifier_forward(ndata, padded_params, f_out, *, node_tile=512):
    """Run the NodeClassifier MLP with a Pallas kernel, tiled over nodes.

    `padded_params` must come from pad_params(); `f_out` is the true (unpadded)
    output feature count.
    """
    (w1, b1), (w2, b2), (w3, b3), (w4, b4) = padded_params
    n, f_in = ndata.shape
    f_in_p = w1.shape[0]
    f_out_p = w4.shape[1]

    # Effective tile: never exceed the (sublane-rounded) node count for tiny
    # inputs, but keep it large for big N to fill the MXU and amortize the
    # per-grid-step pipeline overhead.
    tile = min(node_tile, _round_up(n, SUBLANE))
    n_pad = _round_up(n, tile)

    # Single pad covers both the row pad (grid divisibility) and the column
    # pad (lane-dense x tile: f_in -> 128).
    if (n_pad != n) or (f_in_p != f_in):
        ndata = jnp.pad(ndata, ((0, n_pad - n), (0, f_in_p - f_in)))

    grid = (n_pad // tile,)

    # Weights/biases: full-array blocks with grid-invariant index_maps
    # (Pallas hoists their copies out of the grid loop).
    def full_spec(arr):
        return pl.BlockSpec(arr.shape, lambda i: (0,) * arr.ndim)

    flops = 2 * n_pad * (w1.shape[0] * w1.shape[1]
                         + w2.shape[0] * w2.shape[1]
                         + w3.shape[0] * w3.shape[1]
                         + w4.shape[0] * w4.shape[1])
    bytes_accessed = 4 * (ndata.size
                          + w1.size + b1.size + w2.size + b2.size
                          + w3.size + b3.size + w4.size + b4.size
                          + n_pad * f_out_p)

    out = pl.pallas_call(
        _mlp_kernel,
        out_shape=jax.ShapeDtypeStruct((n_pad, f_out_p), jnp.float32),
        grid_spec=pltpu.PrefetchScalarGridSpec(
            num_scalar_prefetch=0,
            grid=grid,
            in_specs=[
                pl.BlockSpec((tile, f_in_p), lambda i: (i, 0)),  # x tile
                full_spec(w1), full_spec(b1),
                full_spec(w2), full_spec(b2),
                full_spec(w3), full_spec(b3),
                full_spec(w4), full_spec(b4),
            ],
            out_specs=pl.BlockSpec((tile, f_out_p), lambda i: (i, 0)),
        ),
        compiler_params=pltpu.CompilerParams(
            # Node tiles are independent -> shard across TensorCores (v7x).
            dimension_semantics=("parallel",),
        ),
        cost_estimate=pl.CostEstimate(
            flops=flops, transcendentals=0, bytes_accessed=bytes_accessed),
    )(ndata, w1, b1, w2, b2, w3, b3, w4, b4)

    # Slice off node-row padding and the lane padding of the output features.
    return out[:n, :f_out]


def init_params(key, inputsize, outputsize):
    """Deterministic init matching PyTorch nn.Linear default (U[-1/sqrt(fan_in), +]).

    Weights stored as [in_features, out_features] (transposed vs PyTorch),
    biases as [1, out_features] so the kernel computes h = x @ W + b.
    """
    sizes = [(inputsize, 300), (300, 200), (200, 100), (100, outputsize)]
    params = []
    for (fan_in, fan_out) in sizes:
        key, kw, kb = jax.random.split(key, 3)
        bound = 1.0 / jnp.sqrt(float(fan_in))
        w = jax.random.uniform(kw, (fan_in, fan_out), jnp.float32, -bound, bound)
        b = jax.random.uniform(kb, (1, fan_out), jnp.float32, -bound, bound)
        params.append((w, b))
    return params


def reference_forward(ndata, params):
    h = ndata
    for i, (w, b) in enumerate(params):
        h = h @ w + b
        if i < len(params) - 1:
            h = jnp.maximum(h, 0.0)
    return h


if __name__ == "__main__":
    key = jax.random.PRNGKey(0)
    inputsize, outputsize = 32, 10
    num_nodes = 16  # small node batch

    kx, kp = jax.random.split(key)
    ndata = jax.random.normal(kx, (num_nodes, inputsize), jnp.float32)
    params = init_params(kp, inputsize, outputsize)

    # Pad weights/biases to lane-dense shapes once, outside the forward pass.
    padded_params = pad_params(params)

    fwd = jax.jit(functools.partial(node_classifier_forward,
                                    f_out=outputsize, node_tile=512))
    out = fwd(ndata, padded_params)
    jax.block_until_ready(out)

    ref = reference_forward(ndata, params)
    assert out.shape == (num_nodes, outputsize)
    assert jnp.allclose(out, ref, atol=1e-4, rtol=1e-4)

    print("KERNEL_OK")
</pallas_src>

<mosaic_0001>
module attributes {stable_mosaic.version = 11 : i64} {
  func.func @_mlp_kernel(%arg0: i32, %arg1: memref<16x128xf32, #tpu.memory_space<vmem>>, %arg2: memref<128x384xf32, #tpu.memory_space<vmem>>, %arg3: memref<1x384xf32, #tpu.memory_space<vmem>>, %arg4: memref<384x256xf32, #tpu.memory_space<vmem>>, %arg5: memref<1x256xf32, #tpu.memory_space<vmem>>, %arg6: memref<256x128xf32, #tpu.memory_space<vmem>>, %arg7: memref<1x128xf32, #tpu.memory_space<vmem>>, %arg8: memref<128x128xf32, #tpu.memory_space<vmem>>, %arg9: memref<1x128xf32, #tpu.memory_space<vmem>>, %arg10: memref<16x128xf32, #tpu.memory_space<vmem>>) attributes {dimension_semantics = [#tpu.dimension_semantics<parallel>], iteration_bounds = array<i64: 1>, scalar_prefetch = 0 : i64, scratch_operands = 0 : i64, tpu.core_type = #tpu.core_type<tc>, window_params = [{transform_indices = @transform_0, window_bounds = array<i64: 16, 128>}, {pipeline_mode = #tpu.pipeline_mode<synchronous>, transform_indices = @transform_1, window_bounds = array<i64: 128, 384>}, {pipeline_mode = #tpu.pipeline_mode<synchronous>, transform_indices = @transform_2, window_bounds = array<i64: 1, 384>}, {pipeline_mode = #tpu.pipeline_mode<synchronous>, transform_indices = @transform_3, window_bounds = array<i64: 384, 256>}, {pipeline_mode = #tpu.pipeline_mode<synchronous>, transform_indices = @transform_4, window_bounds = array<i64: 1, 256>}, {pipeline_mode = #tpu.pipeline_mode<synchronous>, transform_indices = @transform_5, window_bounds = array<i64: 256, 128>}, {pipeline_mode = #tpu.pipeline_mode<synchronous>, transform_indices = @transform_6, window_bounds = array<i64: 1, 128>}, {pipeline_mode = #tpu.pipeline_mode<synchronous>, transform_indices = @transform_7, window_bounds = array<i64: 128, 128>}, {pipeline_mode = #tpu.pipeline_mode<synchronous>, transform_indices = @transform_8, window_bounds = array<i64: 1, 128>}, {transform_indices = @transform_9, window_bounds = array<i64: 16, 128>}]} {
    %c0 = arith.constant 0 : index
    %c0_0 = arith.constant 0 : index
    %0 = vector.load %arg1[%c0, %c0_0] : memref<16x128xf32, #tpu.memory_space<vmem>>, vector<16x128xf32>
    %c0_1 = arith.constant 0 : index
    %c0_2 = arith.constant 0 : index
    %1 = vector.load %arg2[%c0_1, %c0_2] : memref<128x384xf32, #tpu.memory_space<vmem>>, vector<128x384xf32>
    %cst = arith.constant dense<0.000000e+00> : vector<16x384xf32>
    %2 = tpu.matmul %0, %1, %cst {dimension_numbers = #tpu.dot_dimension_numbers<[1], [0], [0], [1], [0, 0, 1, 1], [], []>} : vector<16x128xf32>, vector<128x384xf32>, vector<16x384xf32> -> vector<16x384xf32>
    %c0_3 = arith.constant 0 : index
    %c0_4 = arith.constant 0 : index
    %3 = vector.load %arg3[%c0_3, %c0_4] : memref<1x384xf32, #tpu.memory_space<vmem>>, vector<1x384xf32>
    %4 = vector.broadcast %3 : vector<1x384xf32> to vector<16x384xf32>
    %5 = arith.addf %2, %4 : vector<16x384xf32>
    %cst_5 = arith.constant 0.000000e+00 : f32
    %6 = vector.broadcast %cst_5 : f32 to vector<16x384xf32>
    %7 = arith.maximumf %5, %6 : vector<16x384xf32>
    %c0_6 = arith.constant 0 : index
    %c0_7 = arith.constant 0 : index
    %8 = vector.load %arg4[%c0_6, %c0_7] : memref<384x256xf32, #tpu.memory_space<vmem>>, vector<384x256xf32>
    %cst_8 = arith.constant dense<0.000000e+00> : vector<16x256xf32>
    %9 = tpu.matmul %7, %8, %cst_8 {dimension_numbers = #tpu.dot_dimension_numbers<[1], [0], [0], [1], [0, 0, 1, 1], [], []>} : vector<16x384xf32>, vector<384x256xf32>, vector<16x256xf32> -> vector<16x256xf32>
    %c0_9 = arith.constant 0 : index
    %c0_10 = arith.constant 0 : index
    %10 = vector.load %arg5[%c0_9, %c0_10] : memref<1x256xf32, #tpu.memory_space<vmem>>, vector<1x256xf32>
    %11 = vector.broadcast %10 : vector<1x256xf32> to vector<16x256xf32>
    %12 = arith.addf %9, %11 : vector<16x256xf32>
    %cst_11 = arith.constant 0.000000e+00 : f32
    %13 = vector.broadcast %cst_11 : f32 to vector<16x256xf32>
    %14 = arith.maximumf %12, %13 : vector<16x256xf32>
    %c0_12 = arith.constant 0 : index
    %c0_13 = arith.constant 0 : index
    %15 = vector.load %arg6[%c0_12, %c0_13] : memref<256x128xf32, #tpu.memory_space<vmem>>, vector<256x128xf32>
    %cst_14 = arith.constant dense<0.000000e+00> : vector<16x128xf32>
    %16 = tpu.matmul %14, %15, %cst_14 {dimension_numbers = #tpu.dot_dimension_numbers<[1], [0], [0], [1], [0, 0, 1, 1], [], []>} : vector<16x256xf32>, vector<256x128xf32>, vector<16x128xf32> -> vector<16x128xf32>
    %c0_15 = arith.constant 0 : index
    %c0_16 = arith.constant 0 : index
    %17 = vector.load %arg7[%c0_15, %c0_16] : memref<1x128xf32, #tpu.memory_space<vmem>>, vector<1x128xf32>
    %18 = vector.broadcast %17 : vector<1x128xf32> to vector<16x128xf32>
    %19 = arith.addf %16, %18 : vector<16x128xf32>
    %cst_17 = arith.constant 0.000000e+00 : f32
    %20 = vector.broadcast %cst_17 : f32 to vector<16x128xf32>
    %21 = arith.maximumf %19, %20 : vector<16x128xf32>
    %c0_18 = arith.constant 0 : index
    %c0_19 = arith.constant 0 : index
    %22 = vector.load %arg8[%c0_18, %c0_19] : memref<128x128xf32, #tpu.memory_space<vmem>>, vector<128x128xf32>
    %cst_20 = arith.constant dense<0.000000e+00> : vector<16x128xf32>
    %23 = tpu.matmul %21, %22, %cst_20 {dimension_numbers = #tpu.dot_dimension_numbers<[1], [0], [0], [1], [0, 0, 1, 1], [], []>} : vector<16x128xf32>, vector<128x128xf32>, vector<16x128xf32> -> vector<16x128xf32>
    %c0_21 = arith.constant 0 : index
    %c0_22 = arith.constant 0 : index
    %24 = vector.load %arg9[%c0_21, %c0_22] : memref<1x128xf32, #tpu.memory_space<vmem>>, vector<1x128xf32>
    %25 = vector.broadcast %24 : vector<1x128xf32> to vector<16x128xf32>
    %26 = arith.addf %23, %25 : vector<16x128xf32>
    %c0_23 = arith.constant 0 : index
    %c0_24 = arith.constant 0 : index
    %27 = vector.load %arg10[%c0_23, %c0_24] : memref<16x128xf32, #tpu.memory_space<vmem>>, vector<16x128xf32>
    tpu.vector_store %arg10[%c0_23, %c0_24], %26 {strides = array<i32>} : memref<16x128xf32, #tpu.memory_space<vmem>>, vector<16x128xf32>,
    return
  }
  func.func @transform_0(%arg0: i32) -> (i32, i32) {
    %c0_i32 = arith.constant 0 : i32
    %c0_i32_0 = arith.constant 0 : i32
    return %arg0, %c0_i32 : i32, i32
  }
  func.func @transform_1(%arg0: i32) -> (i32, i32) {
    %c0_i32 = arith.constant 0 : i32
    %c0_i32_0 = arith.constant 0 : i32
    %c0_i32_1 = arith.constant 0 : i32
    return %c0_i32, %c0_i32_0 : i32, i32
  }
  func.func @transform_2(%arg0: i32) -> (i32, i32) {
    %c0_i32 = arith.constant 0 : i32
    %c0_i32_0 = arith.constant 0 : i32
    %c0_i32_1 = arith.constant 0 : i32
    return %c0_i32, %c0_i32_0 : i32, i32
  }
  func.func @transform_3(%arg0: i32) -> (i32, i32) {
    %c0_i32 = arith.constant 0 : i32
    %c0_i32_0 = arith.constant 0 : i32
    %c0_i32_1 = arith.constant 0 : i32
    return %c0_i32, %c0_i32_0 : i32, i32
  }
  func.func @transform_4(%arg0: i32) -> (i32, i32) {
    %c0_i32 = arith.constant 0 : i32
    %c0_i32_0 = arith.constant 0 : i32
    %c0_i32_1 = arith.constant 0 : i32
    return %c0_i32, %c0_i32_0 : i32, i32
  }
  func.func @transform_5(%arg0: i32) -> (i32, i32) {
    %c0_i32 = arith.constant 0 : i32
    %c0_i32_0 = arith.constant 0 : i32
    %c0_i32_1 = arith.constant 0 : i32
    return %c0_i32, %c0_i32_0 : i32, i32
  }
  func.func @transform_6(%arg0: i32) -> (i32, i32) {
    %c0_i32 = arith.constant 0 : i32
    %c0_i32_0 = arith.constant 0 : i32
    %c0_i32_1 = arith.constant 0 : i32
    return %c0_i32, %c0_i32_0 : i32, i32
  }
  func.func @transform_7(%arg0: i32) -> (i32, i32) {
    %c0_i32 = arith.constant 0 : i32
    %c0_i32_0 = arith.constant 0 : i32
    %c0_i32_1 = arith.constant 0 : i32
    return %c0_i32, %c0_i32_0 : i32, i32
  }
  func.func @transform_8(%arg0: i32) -> (i32, i32) {
    %c0_i32 = arith.constant 0 : i32
    %c0_i32_0 = arith.constant 0 : i32
    %c0_i32_1 = arith.constant 0 : i32
    return %c0_i32, %c0_i32_0 : i32, i32
  }
  func.func @transform_9(%arg0: i32) -> (i32, i32) {
    %c0_i32 = arith.constant 0 : i32
    %c0_i32_0 = arith.constant 0 : i32
    return %arg0, %c0_i32 : i32, i32
  }
}

</mosaic_0001>

<llo_original>
// kernel: node_classifier_forward.1
$region0: #{node_classifier_forward.1}
  #allocation0 [shape = 'u32[]', space=smem, size = 0x4, offset = 0x4, fixed_abs, tag = 'smem constant byte address 0x4 - core index']
  #allocation1 [shape = 'u32[144,128]{1,0:T(1,128)}', space=vmem, size = 0x12000, scoped, tag = 'internal scratch']
  %s0 = inlined_call_operand.vmem [shape: f32[16,128], index: 0, kind: input, shape index: {}]
  %s1 = inlined_call_operand.hbm [shape: f32[128,384], index: 1, kind: input, shape index: {}]
  %s2 = inlined_call_operand.vmem [shape: f32[1,384], index: 2, kind: input, shape index: {}]
  %s3 = inlined_call_operand.hbm [shape: f32[384,256], index: 3, kind: input, shape index: {}]
  %s4 = inlined_call_operand.vmem [shape: f32[1,256], index: 4, kind: input, shape index: {}]
  %s5 = inlined_call_operand.hbm [shape: f32[256,128], index: 5, kind: input, shape index: {}]
  %s6 = inlined_call_operand.vmem [shape: f32[1,128], index: 6, kind: input, shape index: {}]
  %s7 = inlined_call_operand.hbm [shape: f32[128,128], index: 7, kind: input, shape index: {}]
  %s8 = inlined_call_operand.vmem [shape: f32[1,128], index: 8, kind: input, shape index: {}]
  %s9 = inlined_call_operand.hbm [shape: f32[16,128], index: 9, kind: output, shape index: {}]
  %s10 = sld [smem:[#allocation0]]
  $region62: #{node_classifier_forward.1} parent=0
    _
  %s12 = ssub.s32 1, %s10
  %s13 = scalar_select 0, %s12, %s10
  $region1: #{node_classifier_forward.1} parent=0
    #allocation2 [shape = 'u8[196608]{0}', space=vmem, size = 0x30000, scoped, tag = 'input window, operand 1, single buffered']
    #allocation3 [shape = 's32[1]{0}', space=sflag, size = 0x4, scoped, tag = 'scoped memory for node_classifier_forward.1']
    #allocation4 [shape = 's32[1]{0}', space=sflag, size = 0x4, scoped, tag = 'scoped memory for node_classifier_forward.1']
    #allocation5 [shape = 'u8[393216]{0}', space=vmem, size = 0x60000, scoped, tag = 'input window, operand 3, single buffered']
    #allocation6 [shape = 's32[1]{0}', space=sflag, size = 0x4, scoped, tag = 'scoped memory for node_classifier_forward.1']
    #allocation7 [shape = 'u8[131072]{0}', space=vmem, size = 0x20000, scoped, tag = 'input window, operand 5, single buffered']
    #allocation8 [shape = 'u8[65536]{0}', space=vmem, size = 0x10000, scoped, tag = 'input window, operand 7, single buffered']
    #allocation9 [shape = 's32[1]{0}', space=sflag, size = 0x4, scoped, tag = 'scoped memory for node_classifier_forward.1']
    #allocation10 [shape = 'u8[8192]{0}', space=vmem, size = 0x2000, scoped, tag = 'output window, operand 0, single buffered']
    %14 = vsyncpa [#allocation3], 0
    %15 = vsyncpa [#allocation6], 0
    %16 = vsyncpa [#allocation9], 0
    %17 = vsyncpa [#allocation4], 0
    // Predicated region
    $region2: #{node_classifier_forward.1} parent=1 // pred_check
      _
    $region3: #{node_classifier_forward.1} parent=1 // pred_check_branch
      %19 = sbr.rel (0) target = $region5
    $region4: #{node_classifier_forward.1} parent=1 // pred_region
      _
    $region5: #{node_classifier_forward.1} parent=1 // pred_fallthru
      _
    // Predicated region
    $region6: #{node_classifier_forward.1} parent=1 // pred_check
      _
    $region7: #{node_classifier_forward.1} parent=1 // pred_check_branch
      %21 = sbr.rel (0) target = $region9
    $region8: #{node_classifier_forward.1} parent=1 // pred_region
      %s23 = ssub.s32 6144, 6144
      %24 = vsyncadd [#allocation3], %s23
      %s25 = sshll.u32 [#allocation2], 4
      %s26 = int_to_ptr.vmem [resolvable:$true] %s25
      %31 = dma.hbm_to_vmem [thread:$0]  %s1, 6144, %s26, [#allocation3], 384, 384, 24
    $region9: #{node_classifier_forward.1} parent=1 // pred_fallthru
      _
    // Predicated region
    $region10: #{node_classifier_forward.1} parent=1 // pred_check
      _
    $region11: #{node_classifier_forward.1} parent=1 // pred_check_branch
      %33 = sbr.rel (0) target = $region13
    $region12: #{node_classifier_forward.1} parent=1 // pred_region
      _
    $region13: #{node_classifier_forward.1} parent=1 // pred_fallthru
      _
    // Predicated region
    $region14: #{node_classifier_forward.1} parent=1 // pred_check
      _
    $region15: #{node_classifier_forward.1} parent=1 // pred_check_branch
      %35 = sbr.rel (0) target = $region17
    $region16: #{node_classifier_forward.1} parent=1 // pred_region
      %s37 = ssub.s32 12288, 12288
      %38 = vsyncadd [#allocation6], %s37
      %s39 = sshll.u32 [#allocation5], 4
      %s40 = int_to_ptr.vmem [resolvable:$true] %s39
      %45 = dma.hbm_to_vmem [thread:$0]  %s3, 12288, %s40, [#allocation6], 256, 256, 16
    $region17: #{node_classifier_forward.1} parent=1 // pred_fallthru
      _
    // Predicated region
    $region18: #{node_classifier_forward.1} parent=1 // pred_check
      _
    $region19: #{node_classifier_forward.1} parent=1 // pred_check_branch
      %47 = sbr.rel (0) target = $region21
    $region20: #{node_classifier_forward.1} parent=1 // pred_region
      _
    $region21: #{node_classifier_forward.1} parent=1 // pred_fallthru
      _
    // Predicated region
    $region22: #{node_classifier_forward.1} parent=1 // pred_check
      _
    $region23: #{node_classifier_forward.1} parent=1 // pred_check_branch
      %49 = sbr.rel (0) target = $region25
    $region24: #{node_classifier_forward.1} parent=1 // pred_region
      %s51 = ssub.s32 4096, 4096
      %52 = vsyncadd [#allocation6], %s51
      %s53 = sshll.u32 [#allocation7], 4
      %s54 = int_to_ptr.vmem [resolvable:$true] %s53
      %59 = dma.hbm_to_vmem [thread:$0]  %s5, 4096, %s54, [#allocation6], 128, 128, 8
    $region25: #{node_classifier_forward.1} parent=1 // pred_fallthru
      _
    // Predicated region
    $region26: #{node_classifier_forward.1} parent=1 // pred_check
      _
    $region27: #{node_classifier_forward.1} parent=1 // pred_check_branch
      %61 = sbr.rel (0) target = $region29
    $region28: #{node_classifier_forward.1} parent=1 // pred_region
      _
    $region29: #{node_classifier_forward.1} parent=1 // pred_fallthru
      _
    // Predicated region
    $region30: #{node_classifier_forward.1} parent=1 // pred_check
      _
    $region31: #{node_classifier_forward.1} parent=1 // pred_check_branch
      %63 = sbr.rel (0) target = $region33
    $region32: #{node_classifier_forward.1} parent=1 // pred_region
      %s65 = ssub.s32 2048, 2048
      %66 = vsyncadd [#allocation9], %s65
      %s67 = sshll.u32 [#allocation8], 4
      %s68 = int_to_ptr.vmem [resolvable:$true] %s67
      %73 = dma.hbm_to_vmem [thread:$0]  %s7, 2048, %s68, [#allocation9], 128, 128, 8
    $region33: #{node_classifier_forward.1} parent=1 // pred_fallthru
      _
    // Predicated region
    $region34: #{node_classifier_forward.1} parent=1 // pred_check
      _
    $region35: #{node_classifier_forward.1} parent=1 // pred_check_branch
      %75 = sbr.rel (0) target = $region37
    $region36: #{node_classifier_forward.1} parent=1 // pred_region
      _
    $region37: #{node_classifier_forward.1} parent=1 // pred_fallthru
      _
    // Predicated region
    $region38: #{node_classifier_forward.1} parent=1 // pred_check
      _
    $region39: #{node_classifier_forward.1} parent=1 // pred_check_branch
      %77 = sbr.rel (0) target = $region41
    $region40: #{node_classifier_forward.1} parent=1 // pred_region
      %78 = dma.done [#allocation3], 6144
    $region41: #{node_classifier_forward.1} parent=1 // pred_fallthru
      _
    // Predicated region
    $region42: #{node_classifier_forward.1} parent=1 // pred_check
      _
    $region43: #{node_classifier_forward.1} parent=1 // pred_check_branch
      %80 = sbr.rel (0) target = $region45
    $region44: #{node_classifier_forward.1} parent=1 // pred_region
      %81 = dma.done [#allocation6], 12288
    $region45: #{node_classifier_forward.1} parent=1 // pred_fallthru
      _
    // Predicated region
    $region46: #{node_classifier_forward.1} parent=1 // pred_check
      _
    $region47: #{node_classifier_forward.1} parent=1 // pred_check_branch
      %83 = sbr.rel (0) target = $region49
    $region48: #{node_classifier_forward.1} parent=1 // pred_region
      %84 = dma.done [#allocation6], 4096
    $region49: #{node_classifier_forward.1} parent=1 // pred_fallthru
      _
    // Predicated region
    $region50: #{node_classifier_forward.1} parent=1 // pred_check
      _
    $region51: #{node_classifier_forward.1} parent=1 // pred_check_branch
      %86 = sbr.rel (0) target = $region53
    $region52: #{node_classifier_forward.1} parent=1 // pred_region
      %87 = dma.done [#allocation9], 2048
    $region53: #{node_classifier_forward.1} parent=1 // pred_fallthru
      _
    %v88 = vld [vmem:[%s0] sm:$0xff]
    %v89 = vld [vmem:[%s0 + $0x8] sm:$0xff]
    %v90 = vld [vmem:[#allocation2] sm:$0xff]
    %v91 = vld [vmem:[#allocation2 + $0x8] sm:$0xff]
    %v92 = vld [vmem:[#allocation2 + $0x10] sm:$0xff]
    %v93 = vld [vmem:[#allocation2 + $0x18] sm:$0xff]
    %v94 = vld [vmem:[#allocation2 + $0x20] sm:$0xff]
    %v95 = vld [vmem:[#allocation2 + $0x28] sm:$0xff]
    %v96 = vld [vmem:[#allocation2 + $0x30] sm:$0xff]
    %v97 = vld [vmem:[#allocation2 + $0x38] sm:$0xff]
    %v98 = vld [vmem:[#allocation2 + $0x40] sm:$0xff]
    %v99 = vld [vmem:[#allocation2 + $0x48] sm:$0xff]
    %v100 = vld [vmem:[#allocation2 + $0x50] sm:$0xff]
    %v101 = vld [vmem:[#allocation2 + $0x58] sm:$0xff]
    %v102 = vld [vmem:[#allocation2 + $0x60] sm:$0xff]
    %v103 = vld [vmem:[#allocation2 + $0x68] sm:$0xff]
    %v104 = vld [vmem:[#allocation2 + $0x70] sm:$0xff]
    %v105 = vld [vmem:[#allocation2 + $0x78] sm:$0xff]
    %v106 = vld [vmem:[#allocation2 + $0x80] sm:$0xff]
    %v107 = vld [vmem:[#allocation2 + $0x88] sm:$0xff]
    %v108 = vld [vmem:[#allocation2 + $0x90] sm:$0xff]
    %v109 = vld [vmem:[#allocation2 + $0x98] sm:$0xff]
    %v110 = vld [vmem:[#allocation2 + $0xa0] sm:$0xff]
    %v111 = vld [vmem:[#allocation2 + $0xa8] sm:$0xff]
    %v112 = vld [vmem:[#allocation2 + $0xb0] sm:$0xff]
    %v113 = vld [vmem:[#allocation2 + $0xb8] sm:$0xff]
    %v114 = vld [vmem:[#allocation2 + $0xc0] sm:$0xff]
    %v115 = vld [vmem:[#allocation2 + $0xc8] sm:$0xff]
    %v116 = vld [vmem:[#allocation2 + $0xd0] sm:$0xff]
    %v117 = vld [vmem:[#allocation2 + $0xd8] sm:$0xff]
    %v118 = vld [vmem:[#allocation2 + $0xe0] sm:$0xff]
    %v119 = vld [vmem:[#allocation2 + $0xe8] sm:$0xff]
    %v120 = vld [vmem:[#allocation2 + $0xf0] sm:$0xff]
    %v121 = vld [vmem:[#allocation2 + $0xf8] sm:$0xff]
    %v122 = vld [vmem:[#allocation2 + $0x100] sm:$0xff]
    %v123 = vld [vmem:[#allocation2 + $0x108] sm:$0xff]
    %v124 = vld [vmem:[#allocation2 + $0x110] sm:$0xff]
    %v125 = vld [vmem:[#allocation2 + $0x118] sm:$0xff]
    %v126 = vld [vmem:[#allocation2 + $0x120] sm:$0xff]
    %v127 = vld [vmem:[#allocation2 + $0x128] sm:$0xff]
    %v128 = vld [vmem:[#allocation2 + $0x130] sm:$0xff]
    %v129 = vld [vmem:[#allocation2 + $0x138] sm:$0xff]
    %v130 = vld [vmem:[#allocation2 + $0x140] sm:$0xff]
    %v131 = vld [vmem:[#allocation2 + $0x148] sm:$0xff]
    %v132 = vld [vmem:[#allocation2 + $0x150] sm:$0xff]
    %v133 = vld [vmem:[#allocation2 + $0x158] sm:$0xff]
    %v134 = vld [vmem:[#allocation2 + $0x160] sm:$0xff]
    %v135 = vld [vmem:[#allocation2 + $0x168] sm:$0xff]
    %v136 = vld [vmem:[#allocation2 + $0x170] sm:$0xff]
    %v137 = vld [vmem:[#allocation2 + $0x178] sm:$0xff]
    %v138 = vld [vmem:[%s2] sm:$0x7]
    %v140 = vlaneseq
    %v141 = vshrl.u32 %v140, 7
    %v142 = vsub.s32 0, %v141
    %v143 = vrot.slane %v138, %v142
    %v144 = vlaneseq
    %v145 = vshrl.u32 %v144, 7
    %v146 = vsub.s32 1, %v145
    %v147 = vrot.slane %v138, %v146
    %v148 = vlaneseq
    %v149 = vshrl.u32 %v148, 7
    %v150 = vsub.s32 2, %v149
    %v151 = vrot.slane %v138, %v150
    %155 = vmatprep.subr.mxu0 %v91
    %156 = vmatpush1.msra.mxu0 %v90
    %157 = vmatprep.subr.mxu0 %v94
    %158 = vmatpush1.msra.mxu0 %v93
    %159 = vmatprep.subr.mxu0 %v97
    %160 = vmatpush1.msra.mxu0 %v96
    %161 = vmatprep.subr.mxu0 %v100
    %162 = vmatpush1.msra.mxu0 %v99
    %163 = vmatprep.subr.mxu0 %v103
    %164 = vmatpush1.msra.mxu0 %v102
    %165 = vmatprep.subr.mxu0 %v106
    %166 = vmatpush1.msra.mxu0 %v105
    %167 = vmatprep.subr.mxu0 %v109
    %168 = vmatpush1.msra.mxu0 %v108
    %169 = vmatprep.subr.mxu0 %v112
    %170 = vmatpush1.msra.mxu0 %v111
    %171 = vmatprep.subr.mxu0 %v115
    %172 = vmatpush1.msra.mxu0 %v114
    %173 = vmatprep.subr.mxu0 %v118
    %174 = vmatpush1.msra.mxu0 %v117
    %175 = vmatprep.subr.mxu0 %v121
    %176 = vmatpush1.msra.mxu0 %v120
    %177 = vmatprep.subr.mxu0 %v124
    %178 = vmatpush1.msra.mxu0 %v123
    %179 = vmatprep.subr.mxu0 %v127
    %180 = vmatpush1.msra.mxu0 %v126
    %181 = vmatprep.subr.mxu0 %v130
    %182 = vmatpush1.msra.mxu0 %v129
    %183 = vmatprep.subr.mxu0 %v133
    %184 = vmatpush1.msra.mxu0 %v132
    %185 = vmatprep.subr.mxu0 %v136
    %186 = vmatpush1.msra.mxu0 %v135
    %187 = vmatprep.subr.mxu0 0.0
    %188 = vmatpush1.msra.mxu0 0.0
    %189 = vmatprep.subr.mxu0 0.0
    %190 = vmatpush1.msra.mxu0 0.0
    %191 = vmatprep.subr.mxu0 0.0
    %192 = vmatpush1.msra.mxu0 0.0
    %193 = vmatprep.subr.mxu0 0.0
    %194 = vmatpush1.msra.mxu0 0.0
    %195 = vmatprep.subr.mxu0 0.0
    %196 = vmatpush1.msra.mxu0 0.0
    %197 = vmatprep.subr.mxu0 0.0
    %198 = vmatpush1.msra.mxu0 0.0
    %199 = vmatprep.subr.mxu0 0.0
    %200 = vmatpush1.msra.mxu0 0.0
    %201 = vmatprep.subr.mxu0 0.0
    %202 = vmatpush1.msra.mxu0 0.0
    %203 = vmatprep.subr.mxu0 0.0
    %204 = vmatpush1.msra.mxu0 0.0
    %205 = vmatprep.subr.mxu0 0.0
    %206 = vmatpush1.msra.mxu0 0.0
    %207 = vmatprep.subr.mxu0 0.0
    %208 = vmatpush1.msra.mxu0 0.0
    %209 = vmatprep.subr.mxu0 0.0
    %210 = vmatpush1.msra.mxu0 0.0
    %211 = vmatprep.subr.mxu0 0.0
    %212 = vmatpush1.msra.mxu0 0.0
    %213 = vmatprep.subr.mxu0 0.0
    %214 = vmatpush1.msra.mxu0 0.0
    %215 = vmatprep.subr.mxu0 0.0
    %216 = vmatpush1.msra.mxu0 0.0
    %217 = vmatprep.subr.mxu0 0.0
    %218 = vmatpush1.msra.mxu0 0.0
    %219 = vmatprep.mubr.f32.mxu0 0.0
    %220 = vmatmul.mubr.f32.gmra.mrb[0].mxu0 %v88
    %v221 = vpop.f32.mrb[0].mxu0
    %v222 = vadd.f32 %v143, %v221
    %v223 = vpop.f32.mrb[0].mxu0
    %v224 = vadd.f32 %v147, %v223
    %225 = vmatprep.mubr.f32.mxu0 0.0
    %226 = vmatmul.mubr.f32.gmra.mrb[0].mxu0 %v89
    %v227 = vpop.f32.mrb[0].mxu0
    %v228 = vadd.f32 %v143, %v227
    %v229 = vpop.f32.mrb[0].mxu0
    %v230 = vadd.f32 %v147, %v229
    %231 = vdwg.mxu0
    %232 = vmatprep.subr.mxu0 0.0
    %233 = vmatpush1.msra.mxu0 %v92
    %234 = vmatprep.subr.mxu0 0.0
    %235 = vmatpush1.msra.mxu0 %v95
    %236 = vmatprep.subr.mxu0 0.0
    %237 = vmatpush1.msra.mxu0 %v98
    %238 = vmatprep.subr.mxu0 0.0
    %239 = vmatpush1.msra.mxu0 %v101
    %240 = vmatprep.subr.mxu0 0.0
    %241 = vmatpush1.msra.mxu0 %v104
    %242 = vmatprep.subr.mxu0 0.0
    %243 = vmatpush1.msra.mxu0 %v107
    %244 = vmatprep.subr.mxu0 0.0
    %245 = vmatpush1.msra.mxu0 %v110
    %246 = vmatprep.subr.mxu0 0.0
    %247 = vmatpush1.msra.mxu0 %v113
    %248 = vmatprep.subr.mxu0 0.0
    %249 = vmatpush1.msra.mxu0 %v116
    %250 = vmatprep.subr.mxu0 0.0
    %251 = vmatpush1.msra.mxu0 %v119
    %252 = vmatprep.subr.mxu0 0.0
    %253 = vmatpush1.msra.mxu0 %v122
    %254 = vmatprep.subr.mxu0 0.0
    %255 = vmatpush1.msra.mxu0 %v125
    %256 = vmatprep.subr.mxu0 0.0
    %257 = vmatpush1.msra.mxu0 %v128
    %258 = vmatprep.subr.mxu0 0.0
    %259 = vmatpush1.msra.mxu0 %v131
    %260 = vmatprep.subr.mxu0 0.0
    %261 = vmatpush1.msra.mxu0 %v134
    %262 = vmatprep.subr.mxu0 0.0
    %263 = vmatpush1.msra.mxu0 %v137
    %264 = vmatprep.subr.mxu0 0.0
    %265 = vmatpush1.msra.mxu0 0.0
    %266 = vmatprep.subr.mxu0 0.0
    %267 = vmatpush1.msra.mxu0 0.0
    %268 = vmatprep.subr.mxu0 0.0
    %269 = vmatpush1.msra.mxu0 0.0
    %270 = vmatprep.subr.mxu0 0.0
    %271 = vmatpush1.msra.mxu0 0.0
    %272 = vmatprep.subr.mxu0 0.0
    %273 = vmatpush1.msra.mxu0 0.0
    %274 = vmatprep.subr.mxu0 0.0
    %275 = vmatpush1.msra.mxu0 0.0
    %276 = vmatprep.subr.mxu0 0.0
    %277 = vmatpush1.msra.mxu0 0.0
    %278 = vmatprep.subr.mxu0 0.0
    %279 = vmatpush1.msra.mxu0 0.0
    %280 = vmatprep.subr.mxu0 0.0
    %281 = vmatpush1.msra.mxu0 0.0
    %282 = vmatprep.subr.mxu0 0.0
    %283 = vmatpush1.msra.mxu0 0.0
    %284 = vmatprep.subr.mxu0 0.0
    %285 = vmatpush1.msra.mxu0 0.0
    %286 = vmatprep.subr.mxu0 0.0
    %287 = vmatpush1.msra.mxu0 0.0
    %288 = vmatprep.subr.mxu0 0.0
    %289 = vmatpush1.msra.mxu0 0.0
    %290 = vmatprep.subr.mxu0 0.0
    %291 = vmatpush1.msra.mxu0 0.0
    %292 = vmatprep.subr.mxu0 0.0
    %293 = vmatpush1.msra.mxu0 0.0
    %294 = vmatprep.subr.mxu0 0.0
    %295 = vmatpush1.msra.mxu0 0.0
    %296 = vmatprep.mubr.f32.mxu0 0.0
    %297 = vmatmul.mubr.f32.gmra.mrb[0].mxu0 %v88
    %v298 = vpop.f32.mrb[0].mxu0
    %v299 = vadd.f32 %v151, %v298
    %v300 = vpop.f32.mrb[0].mxu0
    %301 = vmatprep.mubr.f32.mxu0 0.0
    %302 = vmatmul.mubr.f32.gmra.mrb[0].mxu0 %v89
    %v303 = vpop.f32.mrb[0].mxu0
    %v304 = vadd.f32 %v151, %v303
    %v305 = vpop.f32.mrb[0].mxu0
    %306 = vdwg.mxu0
    %v307 = vmax.f32 %v222, 0.0
    %v308 = vmax.f32 %v224, 0.0
    %v309 = vmax.f32 %v299, 0.0
    %v310 = vmax.f32 %v228, 0.0
    %v311 = vmax.f32 %v230, 0.0
    %v312 = vmax.f32 %v304, 0.0
    %v313 = vld [vmem:[#allocation5] sm:$0xff]
    %v314 = vld [vmem:[#allocation5 + $0x8] sm:$0xff]
    %v315 = vld [vmem:[#allocation5 + $0x10] sm:$0xff]
    %v316 = vld [vmem:[#allocation5 + $0x18] sm:$0xff]
    %v317 = vld [vmem:[#allocation5 + $0x20] sm:$0xff]
    %v318 = vld [vmem:[#allocation5 + $0x28] sm:$0xff]
    %v319 = vld [vmem:[#allocation5 + $0x30] sm:$0xff]
    %v320 = vld [vmem:[#allocation5 + $0x38] sm:$0xff]
    %v321 = vld [vmem:[#allocation5 + $0x40] sm:$0xff]
    %v322 = vld [vmem:[#allocation5 + $0x48] sm:$0xff]
    %v323 = vld [vmem:[#allocation5 + $0x50] sm:$0xff]
    %v324 = vld [vmem:[#allocation5 + $0x58] sm:$0xff]
    %v325 = vld [vmem:[#allocation5 + $0x60] sm:$0xff]
    %v326 = vld [vmem:[#allocation5 + $0x68] sm:$0xff]
    %v327 = vld [vmem:[#allocation5 + $0x70] sm:$0xff]
    %v328 = vld [vmem:[#allocation5 + $0x78] sm:$0xff]
    %v329 = vld [vmem:[#allocation5 + $0x80] sm:$0xff]
    %v330 = vld [vmem:[#allocation5 + $0x88] sm:$0xff]
    %v331 = vld [vmem:[#allocation5 + $0x90] sm:$0xff]
    %v332 = vld [vmem:[#allocation5 + $0x98] sm:$0xff]
    %v333 = vld [vmem:[#allocation5 + $0xa0] sm:$0xff]
    %v334 = vld [vmem:[#allocation5 + $0xa8] sm:$0xff]
    %v335 = vld [vmem:[#allocation5 + $0xb0] sm:$0xff]
    %v336 = vld [vmem:[#allocation5 + $0xb8] sm:$0xff]
    %v337 = vld [vmem:[#allocation5 + $0xc0] sm:$0xff]
    %v338 = vld [vmem:[#allocation5 + $0xc8] sm:$0xff]
    %v339 = vld [vmem:[#allocation5 + $0xd0] sm:$0xff]
    %v340 = vld [vmem:[#allocation5 + $0xd8] sm:$0xff]
    %v341 = vld [vmem:[#allocation5 + $0xe0] sm:$0xff]
    %v342 = vld [vmem:[#allocation5 + $0xe8] sm:$0xff]
    %v343 = vld [vmem:[#allocation5 + $0xf0] sm:$0xff]
    %v344 = vld [vmem:[#allocation5 + $0xf8] sm:$0xff]
    %v345 = vld [vmem:[#allocation5 + $0x100] sm:$0xff]
    %v346 = vld [vmem:[#allocation5 + $0x108] sm:$0xff]
    %v347 = vld [vmem:[#allocation5 + $0x110] sm:$0xff]
    %v348 = vld [vmem:[#allocation5 + $0x118] sm:$0xff]
    %v349 = vld [vmem:[#allocation5 + $0x120] sm:$0xff]
    %v350 = vld [vmem:[#allocation5 + $0x128] sm:$0xff]
    %v351 = vld [vmem:[#allocation5 + $0x130] sm:$0xff]
    %v352 = vld [vmem:[#allocation5 + $0x138] sm:$0xff]
    %v353 = vld [vmem:[#allocation5 + $0x140] sm:$0xff]
    %v354 = vld [vmem:[#allocation5 + $0x148] sm:$0xff]
    %v355 = vld [vmem:[#allocation5 + $0x150] sm:$0xff]
    %v356 = vld [vmem:[#allocation5 + $0x158] sm:$0xff]
    %v357 = vld [vmem:[#allocation5 + $0x160] sm:$0xff]
    %v358 = vld [vmem:[#allocation5 + $0x168] sm:$0xff]
    %v359 = vld [vmem:[#allocation5 + $0x170] sm:$0xff]
    %v360 = vld [vmem:[#allocation5 + $0x178] sm:$0xff]
    %v361 = vld [vmem:[#allocation5 + $0x180] sm:$0xff]
    %v362 = vld [vmem:[#allocation5 + $0x188] sm:$0xff]
    %v363 = vld [vmem:[#allocation5 + $0x190] sm:$0xff]
    %v364 = vld [vmem:[#allocation5 + $0x198] sm:$0xff]
    %v365 = vld [vmem:[#allocation5 + $0x1a0] sm:$0xff]
    %v366 = vld [vmem:[#allocation5 + $0x1a8] sm:$0xff]
    %v367 = vld [vmem:[#allocation5 + $0x1b0] sm:$0xff]
    %v368 = vld [vmem:[#allocation5 + $0x1b8] sm:$0xff]
    %v369 = vld [vmem:[#allocation5 + $0x1c0] sm:$0xff]
    %v370 = vld [vmem:[#allocation5 + $0x1c8] sm:$0xff]
    %v371 = vld [vmem:[#allocation5 + $0x1d0] sm:$0xff]
    %v372 = vld [vmem:[#allocation5 + $0x1d8] sm:$0xff]
    %v373 = vld [vmem:[#allocation5 + $0x1e0] sm:$0xff]
    %v374 = vld [vmem:[#allocation5 + $0x1e8] sm:$0xff]
    %v375 = vld [vmem:[#allocation5 + $0x1f0] sm:$0xff]
    %v376 = vld [vmem:[#allocation5 + $0x1f8] sm:$0xff]
    %v377 = vld [vmem:[#allocation5 + $0x200] sm:$0xff]
    %v378 = vld [vmem:[#allocation5 + $0x208] sm:$0xff]
    %v379 = vld [vmem:[#allocation5 + $0x210] sm:$0xff]
    %v380 = vld [vmem:[#allocation5 + $0x218] sm:$0xff]
    %v381 = vld [vmem:[#allocation5 + $0x220] sm:$0xff]
    %v382 = vld [vmem:[#allocation5 + $0x228] sm:$0xff]
    %v383 = vld [vmem:[#allocation5 + $0x230] sm:$0xff]
    %v384 = vld [vmem:[#allocation5 + $0x238] sm:$0xff]
    %v385 = vld [vmem:[#allocation5 + $0x240] sm:$0xff]
    %v386 = vld [vmem:[#allocation5 + $0x248] sm:$0xff]
    %v387 = vld [vmem:[#allocation5 + $0x250] sm:$0xff]
    %v388 = vld [vmem:[#allocation5 + $0x258] sm:$0xff]
    %v389 = vld [vmem:[#allocation5 + $0x260] sm:$0xff]
    %v390 = vld [vmem:[#allocation5 + $0x268] sm:$0xff]
    %v391 = vld [vmem:[#allocation5 + $0x270] sm:$0xff]
    %v392 = vld [vmem:[#allocation5 + $0x278] sm:$0xff]
    %v393 = vld [vmem:[#allocation5 + $0x280] sm:$0xff]
    %v394 = vld [vmem:[#allocation5 + $0x288] sm:$0xff]
    %v395 = vld [vmem:[#allocation5 + $0x290] sm:$0xff]
    %v396 = vld [vmem:[#allocation5 + $0x298] sm:$0xff]
    %v397 = vld [vmem:[#allocation5 + $0x2a0] sm:$0xff]
    %v398 = vld [vmem:[#allocation5 + $0x2a8] sm:$0xff]
    %v399 = vld [vmem:[#allocation5 + $0x2b0] sm:$0xff]
    %v400 = vld [vmem:[#allocation5 + $0x2b8] sm:$0xff]
    %v401 = vld [vmem:[#allocation5 + $0x2c0] sm:$0xff]
    %v402 = vld [vmem:[#allocation5 + $0x2c8] sm:$0xff]
    %v403 = vld [vmem:[#allocation5 + $0x2d0] sm:$0xff]
    %v404 = vld [vmem:[#allocation5 + $0x2d8] sm:$0xff]
    %v405 = vld [vmem:[#allocation5 + $0x2e0] sm:$0xff]
    %v406 = vld [vmem:[#allocation5 + $0x2e8] sm:$0xff]
    %v407 = vld [vmem:[#allocation5 + $0x2f0] sm:$0xff]
    %v408 = vld [vmem:[#allocation5 + $0x2f8] sm:$0xff]
    %v409 = vld [vmem:[%s4] sm:$0x3]
    %v411 = vlaneseq
    %v412 = vshrl.u32 %v411, 7
    %v413 = vsub.s32 0, %v412
    %v414 = vrot.slane %v409, %v413
    %v415 = vlaneseq
    %v416 = vshrl.u32 %v415, 7
    %v417 = vsub.s32 1, %v416
    %v418 = vrot.slane %v409, %v417
    %421 = vmatprep.subr.mxu0 %v314
    %422 = vmatpush1.msra.mxu0 %v313
    %423 = vmatprep.subr.mxu0 %v316
    %424 = vmatpush1.msra.mxu0 %v315
    %425 = vmatprep.subr.mxu0 %v318
    %426 = vmatpush1.msra.mxu0 %v317
    %427 = vmatprep.subr.mxu0 %v320
    %428 = vmatpush1.msra.mxu0 %v319
    %429 = vmatprep.subr.mxu0 %v322
    %430 = vmatpush1.msra.mxu0 %v321
    %431 = vmatprep.subr.mxu0 %v324
    %432 = vmatpush1.msra.mxu0 %v323
    %433 = vmatprep.subr.mxu0 %v326
    %434 = vmatpush1.msra.mxu0 %v325
    %435 = vmatprep.subr.mxu0 %v328
    %436 = vmatpush1.msra.mxu0 %v327
    %437 = vmatprep.subr.mxu0 %v330
    %438 = vmatpush1.msra.mxu0 %v329
    %439 = vmatprep.subr.mxu0 %v332
    %440 = vmatpush1.msra.mxu0 %v331
    %441 = vmatprep.subr.mxu0 %v334
    %442 = vmatpush1.msra.mxu0 %v333
    %443 = vmatprep.subr.mxu0 %v336
    %444 = vmatpush1.msra.mxu0 %v335
    %445 = vmatprep.subr.mxu0 %v338
    %446 = vmatpush1.msra.mxu0 %v337
    %447 = vmatprep.subr.mxu0 %v340
    %448 = vmatpush1.msra.mxu0 %v339
    %449 = vmatprep.subr.mxu0 %v342
    %450 = vmatpush1.msra.mxu0 %v341
    %451 = vmatprep.subr.mxu0 %v344
    %452 = vmatpush1.msra.mxu0 %v343
    %453 = vmatprep.subr.mxu0 %v346
    %454 = vmatpush1.msra.mxu0 %v345
    %455 = vmatprep.subr.mxu0 %v348
    %456 = vmatpush1.msra.mxu0 %v347
    %457 = vmatprep.subr.mxu0 %v350
    %458 = vmatpush1.msra.mxu0 %v349
    %459 = vmatprep.subr.mxu0 %v352
    %460 = vmatpush1.msra.mxu0 %v351
    %461 = vmatprep.subr.mxu0 %v354
    %462 = vmatpush1.msra.mxu0 %v353
    %463 = vmatprep.subr.mxu0 %v356
    %464 = vmatpush1.msra.mxu0 %v355
    %465 = vmatprep.subr.mxu0 %v358
    %466 = vmatpush1.msra.mxu0 %v357
    %467 = vmatprep.subr.mxu0 %v360
    %468 = vmatpush1.msra.mxu0 %v359
    %469 = vmatprep.subr.mxu0 %v362
    %470 = vmatpush1.msra.mxu0 %v361
    %471 = vmatprep.subr.mxu0 %v364
    %472 = vmatpush1.msra.mxu0 %v363
    %473 = vmatprep.subr.mxu0 %v366
    %474 = vmatpush1.msra.mxu0 %v365
    %475 = vmatprep.subr.mxu0 %v368
    %476 = vmatpush1.msra.mxu0 %v367
    %477 = vmatprep.subr.mxu0 %v370
    %478 = vmatpush1.msra.mxu0 %v369
    %479 = vmatprep.subr.mxu0 %v372
    %480 = vmatpush1.msra.mxu0 %v371
    %481 = vmatprep.subr.mxu0 %v374
    %482 = vmatpush1.msra.mxu0 %v373
    %483 = vmatprep.subr.mxu0 %v376
    %484 = vmatpush1.msra.mxu0 %v375
    %485 = vmatprep.mubr.f32.mxu0 %v308
    %486 = vmatmul.mubr.f32.gmra.mrb[0].mxu0 %v307
    %v487 = vpop.f32.mrb[0].mxu0
    %v488 = vadd.f32 %v414, %v487
    %v489 = vpop.f32.mrb[0].mxu0
    %v490 = vadd.f32 %v418, %v489
    %491 = vmatprep.mubr.f32.mxu0 %v311
    %492 = vmatmul.mubr.f32.gmra.mrb[0].mxu0 %v310
    %v493 = vpop.f32.mrb[0].mxu0
    %v494 = vadd.f32 %v414, %v493
    %v495 = vpop.f32.mrb[0].mxu0
    %v496 = vadd.f32 %v418, %v495
    %497 = vdwg.mxu0
    %498 = vmatprep.subr.mxu0 %v378
    %499 = vmatpush1.msra.mxu0 %v377
    %500 = vmatprep.subr.mxu0 %v380
    %501 = vmatpush1.msra.mxu0 %v379
    %502 = vmatprep.subr.mxu0 %v382
    %503 = vmatpush1.msra.mxu0 %v381
    %504 = vmatprep.subr.mxu0 %v384
    %505 = vmatpush1.msra.mxu0 %v383
    %506 = vmatprep.subr.mxu0 %v386
    %507 = vmatpush1.msra.mxu0 %v385
    %508 = vmatprep.subr.mxu0 %v388
    %509 = vmatpush1.msra.mxu0 %v387
    %510 = vmatprep.subr.mxu0 %v390
    %511 = vmatpush1.msra.mxu0 %v389
    %512 = vmatprep.subr.mxu0 %v392
    %513 = vmatpush1.msra.mxu0 %v391
    %514 = vmatprep.subr.mxu0 %v394
    %515 = vmatpush1.msra.mxu0 %v393
    %516 = vmatprep.subr.mxu0 %v396
    %517 = vmatpush1.msra.mxu0 %v395
    %518 = vmatprep.subr.mxu0 %v398
    %519 = vmatpush1.msra.mxu0 %v397
    %520 = vmatprep.subr.mxu0 %v400
    %521 = vmatpush1.msra.mxu0 %v399
    %522 = vmatprep.subr.mxu0 %v402
    %523 = vmatpush1.msra.mxu0 %v401
    %524 = vmatprep.subr.mxu0 %v404
    %525 = vmatpush1.msra.mxu0 %v403
    %526 = vmatprep.subr.mxu0 %v406
    %527 = vmatpush1.msra.mxu0 %v405
    %528 = vmatprep.subr.mxu0 %v408
    %529 = vmatpush1.msra.mxu0 %v407
    %530 = vmatprep.subr.mxu0 0.0
    %531 = vmatpush1.msra.mxu0 0.0
    %532 = vmatprep.subr.mxu0 0.0
    %533 = vmatpush1.msra.mxu0 0.0
    %534 = vmatprep.subr.mxu0 0.0
    %535 = vmatpush1.msra.mxu0 0.0
    %536 = vmatprep.subr.mxu0 0.0
    %537 = vmatpush1.msra.mxu0 0.0
    %538 = vmatprep.subr.mxu0 0.0
    %539 = vmatpush1.msra.mxu0 0.0
    %540 = vmatprep.subr.mxu0 0.0
    %541 = vmatpush1.msra.mxu0 0.0
    %542 = vmatprep.subr.mxu0 0.0
    %543 = vmatpush1.msra.mxu0 0.0
    %544 = vmatprep.subr.mxu0 0.0
    %545 = vmatpush1.msra.mxu0 0.0
    %546 = vmatprep.subr.mxu0 0.0
    %547 = vmatpush1.msra.mxu0 0.0
    %548 = vmatprep.subr.mxu0 0.0
    %549 = vmatpush1.msra.mxu0 0.0
    %550 = vmatprep.subr.mxu0 0.0
    %551 = vmatpush1.msra.mxu0 0.0
    %552 = vmatprep.subr.mxu0 0.0
    %553 = vmatpush1.msra.mxu0 0.0
    %554 = vmatprep.subr.mxu0 0.0
    %555 = vmatpush1.msra.mxu0 0.0
    %556 = vmatprep.subr.mxu0 0.0
    %557 = vmatpush1.msra.mxu0 0.0
    %558 = vmatprep.subr.mxu0 0.0
    %559 = vmatpush1.msra.mxu0 0.0
    %560 = vmatprep.subr.mxu0 0.0
    %561 = vmatpush1.msra.mxu0 0.0
    %562 = vmatprep.mubr.f32.mxu0 0.0
    %563 = vmatmul.mubr.f32.gmra.mrb[0].mxu0 %v309
    %v564 = vpop.f32.mrb[0].mxu0
    %v565 = vadd.f32 %v488, %v564
    %v566 = vpop.f32.mrb[0].mxu0
    %v567 = vadd.f32 %v490, %v566
    %568 = vmatprep.mubr.f32.mxu0 0.0
    %569 = vmatmul.mubr.f32.gmra.mrb[0].mxu0 %v312
    %v570 = vpop.f32.mrb[0].mxu0
    %v571 = vadd.f32 %v494, %v570
    %v572 = vpop.f32.mrb[0].mxu0
    %v573 = vadd.f32 %v496, %v572
    %574 = vdwg.mxu0
    %v575 = vmax.f32 %v565, 0.0
    %v576 = vmax.f32 %v567, 0.0
    %v577 = vmax.f32 %v571, 0.0
    %v578 = vmax.f32 %v573, 0.0
    %v579 = vld [vmem:[#allocation7] sm:$0xff]
    %v580 = vld [vmem:[#allocation7 + $0x8] sm:$0xff]
    %v581 = vld [vmem:[#allocation7 + $0x10] sm:$0xff]
    %v582 = vld [vmem:[#allocation7 + $0x18] sm:$0xff]
    %v583 = vld [vmem:[#allocation7 + $0x20] sm:$0xff]
    %v584 = vld [vmem:[#allocation7 + $0x28] sm:$0xff]
    %v585 = vld [vmem:[#allocation7 + $0x30] sm:$0xff]
    %v586 = vld [vmem:[#allocation7 + $0x38] sm:$0xff]
    %v587 = vld [vmem:[#allocation7 + $0x40] sm:$0xff]
    %v588 = vld [vmem:[#allocation7 + $0x48] sm:$0xff]
    %v589 = vld [vmem:[#allocation7 + $0x50] sm:$0xff]
    %v590 = vld [vmem:[#allocation7 + $0x58] sm:$0xff]
    %v591 = vld [vmem:[#allocation7 + $0x60] sm:$0xff]
    %v592 = vld [vmem:[#allocation7 + $0x68] sm:$0xff]
    %v593 = vld [vmem:[#allocation7 + $0x70] sm:$0xff]
    %v594 = vld [vmem:[#allocation7 + $0x78] sm:$0xff]
    %v595 = vld [vmem:[#allocation7 + $0x80] sm:$0xff]
    %v596 = vld [vmem:[#allocation7 + $0x88] sm:$0xff]
    %v597 = vld [vmem:[#allocation7 + $0x90] sm:$0xff]
    %v598 = vld [vmem:[#allocation7 + $0x98] sm:$0xff]
    %v599 = vld [vmem:[#allocation7 + $0xa0] sm:$0xff]
    %v600 = vld [vmem:[#allocation7 + $0xa8] sm:$0xff]
    %v601 = vld [vmem:[#allocation7 + $0xb0] sm:$0xff]
    %v602 = vld [vmem:[#allocation7 + $0xb8] sm:$0xff]
    %v603 = vld [vmem:[#allocation7 + $0xc0] sm:$0xff]
    %v604 = vld [vmem:[#allocation7 + $0xc8] sm:$0xff]
    %v605 = vld [vmem:[#allocation7 + $0xd0] sm:$0xff]
    %v606 = vld [vmem:[#allocation7 + $0xd8] sm:$0xff]
    %v607 = vld [vmem:[#allocation7 + $0xe0] sm:$0xff]
    %v608 = vld [vmem:[#allocation7 + $0xe8] sm:$0xff]
    %v609 = vld [vmem:[#allocation7 + $0xf0] sm:$0xff]
    %v610 = vld [vmem:[#allocation7 + $0xf8] sm:$0xff]
    %v611 = vld [vmem:[%s6] sm:$0x1]
    %v613 = vlaneseq
    %v614 = vshrl.u32 %v613, 7
    %v615 = vsub.s32 0, %v614
    %v616 = vrot.slane %v611, %v615
    %618 = vmatprep.subr.mxu0 0.0
    %619 = vmatpush1.msra.mxu0 %v579
    %620 = vmatprep.subr.mxu0 0.0
    %621 = vmatpush1.msra.mxu0 %v580
    %622 = vmatprep.subr.mxu0 0.0
    %623 = vmatpush1.msra.mxu0 %v581
    %624 = vmatprep.subr.mxu0 0.0
    %625 = vmatpush1.msra.mxu0 %v582
    %626 = vmatprep.subr.mxu0 0.0
    %627 = vmatpush1.msra.mxu0 %v583
    %628 = vmatprep.subr.mxu0 0.0
    %629 = vmatpush1.msra.mxu0 %v584
    %630 = vmatprep.subr.mxu0 0.0
    %631 = vmatpush1.msra.mxu0 %v585
    %632 = vmatprep.subr.mxu0 0.0
    %633 = vmatpush1.msra.mxu0 %v586
    %634 = vmatprep.subr.mxu0 0.0
    %635 = vmatpush1.msra.mxu0 %v587
    %636 = vmatprep.subr.mxu0 0.0
    %637 = vmatpush1.msra.mxu0 %v588
    %638 = vmatprep.subr.mxu0 0.0
    %639 = vmatpush1.msra.mxu0 %v589
    %640 = vmatprep.subr.mxu0 0.0
    %641 = vmatpush1.msra.mxu0 %v590
    %642 = vmatprep.subr.mxu0 0.0
    %643 = vmatpush1.msra.mxu0 %v591
    %644 = vmatprep.subr.mxu0 0.0
    %645 = vmatpush1.msra.mxu0 %v592
    %646 = vmatprep.subr.mxu0 0.0
    %647 = vmatpush1.msra.mxu0 %v593
    %648 = vmatprep.subr.mxu0 0.0
    %649 = vmatpush1.msra.mxu0 %v594
    %650 = vmatprep.subr.mxu0 0.0
    %651 = vmatpush1.msra.mxu0 %v595
    %652 = vmatprep.subr.mxu0 0.0
    %653 = vmatpush1.msra.mxu0 %v596
    %654 = vmatprep.subr.mxu0 0.0
    %655 = vmatpush1.msra.mxu0 %v597
    %656 = vmatprep.subr.mxu0 0.0
    %657 = vmatpush1.msra.mxu0 %v598
    %658 = vmatprep.subr.mxu0 0.0
    %659 = vmatpush1.msra.mxu0 %v599
    %660 = vmatprep.subr.mxu0 0.0
    %661 = vmatpush1.msra.mxu0 %v600
    %662 = vmatprep.subr.mxu0 0.0
    %663 = vmatpush1.msra.mxu0 %v601
    %664 = vmatprep.subr.mxu0 0.0
    %665 = vmatpush1.msra.mxu0 %v602
    %666 = vmatprep.subr.mxu0 0.0
    %667 = vmatpush1.msra.mxu0 %v603
    %668 = vmatprep.subr.mxu0 0.0
    %669 = vmatpush1.msra.mxu0 %v604
    %670 = vmatprep.subr.mxu0 0.0
    %671 = vmatpush1.msra.mxu0 %v605
    %672 = vmatprep.subr.mxu0 0.0
    %673 = vmatpush1.msra.mxu0 %v606
    %674 = vmatprep.subr.mxu0 0.0
    %675 = vmatpush1.msra.mxu0 %v607
    %676 = vmatprep.subr.mxu0 0.0
    %677 = vmatpush1.msra.mxu0 %v608
    %678 = vmatprep.subr.mxu0 0.0
    %679 = vmatpush1.msra.mxu0 %v609
    %680 = vmatprep.subr.mxu0 0.0
    %681 = vmatpush1.msra.mxu0 %v610
    %682 = vmatprep.mubr.f32.mxu0 %v576
    %683 = vmatmul.mubr.f32.gmra.mrb[0].mxu0 %v575
    %v684 = vpop.f32.mrb[0].mxu0
    %v685 = vadd.f32 %v616, %v684
    %v686 = vpop.f32.mrb[0].mxu0
    %687 = vmatprep.mubr.f32.mxu0 %v578
    %688 = vmatmul.mubr.f32.gmra.mrb[0].mxu0 %v577
    %v689 = vpop.f32.mrb[0].mxu0
    %v690 = vadd.f32 %v616, %v689
    %v691 = vpop.f32.mrb[0].mxu0
    %692 = vdwg.mxu0
    %v693 = vmax.f32 %v685, 0.0
    %v694 = vmax.f32 %v690, 0.0
    %v695 = vld [vmem:[#allocation8] sm:$0xff]
    %v696 = vld [vmem:[#allocation8 + $0x8] sm:$0xff]
    %v697 = vld [vmem:[#allocation8 + $0x10] sm:$0xff]
    %v698 = vld [vmem:[#allocation8 + $0x18] sm:$0xff]
    %v699 = vld [vmem:[#allocation8 + $0x20] sm:$0xff]
    %v700 = vld [vmem:[#allocation8 + $0x28] sm:$0xff]
    %v701 = vld [vmem:[#allocation8 + $0x30] sm:$0xff]
    %v702 = vld [vmem:[#allocation8 + $0x38] sm:$0xff]
    %v703 = vld [vmem:[#allocation8 + $0x40] sm:$0xff]
    %v704 = vld [vmem:[#allocation8 + $0x48] sm:$0xff]
    %v705 = vld [vmem:[#allocation8 + $0x50] sm:$0xff]
    %v706 = vld [vmem:[#allocation8 + $0x58] sm:$0xff]
    %v707 = vld [vmem:[#allocation8 + $0x60] sm:$0xff]
    %v708 = vld [vmem:[#allocation8 + $0x68] sm:$0xff]
    %v709 = vld [vmem:[#allocation8 + $0x70] sm:$0xff]
    %v710 = vld [vmem:[#allocation8 + $0x78] sm:$0xff]
    %v711 = vld [vmem:[%s8] sm:$0x1]
    %v713 = vlaneseq
    %v714 = vshrl.u32 %v713, 7
    %v715 = vsub.s32 0, %v714
    %v716 = vrot.slane %v711, %v715
    %718 = vmatprep.subr.mxu0 0.0
    %719 = vmatpush1.msra.mxu0 %v695
    %720 = vmatprep.subr.mxu0 0.0
    %721 = vmatpush1.msra.mxu0 %v696
    %722 = vmatprep.subr.mxu0 0.0
    %723 = vmatpush1.msra.mxu0 %v697
    %724 = vmatprep.subr.mxu0 0.0
    %725 = vmatpush1.msra.mxu0 %v698
    %726 = vmatprep.subr.mxu0 0.0
    %727 = vmatpush1.msra.mxu0 %v699
    %728 = vmatprep.subr.mxu0 0.0
    %729 = vmatpush1.msra.mxu0 %v700
    %730 = vmatprep.subr.mxu0 0.0
    %731 = vmatpush1.msra.mxu0 %v701
    %732 = vmatprep.subr.mxu0 0.0
    %733 = vmatpush1.msra.mxu0 %v702
    %734 = vmatprep.subr.mxu0 0.0
    %735 = vmatpush1.msra.mxu0 %v703
    %736 = vmatprep.subr.mxu0 0.0
    %737 = vmatpush1.msra.mxu0 %v704
    %738 = vmatprep.subr.mxu0 0.0
    %739 = vmatpush1.msra.mxu0 %v705
    %740 = vmatprep.subr.mxu0 0.0
    %741 = vmatpush1.msra.mxu0 %v706
    %742 = vmatprep.subr.mxu0 0.0
    %743 = vmatpush1.msra.mxu0 %v707
    %744 = vmatprep.subr.mxu0 0.0
    %745 = vmatpush1.msra.mxu0 %v708
    %746 = vmatprep.subr.mxu0 0.0
    %747 = vmatpush1.msra.mxu0 %v709
    %748 = vmatprep.subr.mxu0 0.0
    %749 = vmatpush1.msra.mxu0 %v710
    %750 = vmatprep.subr.mxu0 0.0
    %751 = vmatpush1.msra.mxu0 0.0
    %752 = vmatprep.subr.mxu0 0.0
    %753 = vmatpush1.msra.mxu0 0.0
    %754 = vmatprep.subr.mxu0 0.0
    %755 = vmatpush1.msra.mxu0 0.0
    %756 = vmatprep.subr.mxu0 0.0
    %757 = vmatpush1.msra.mxu0 0.0
    %758 = vmatprep.subr.mxu0 0.0
    %759 = vmatpush1.msra.mxu0 0.0
    %760 = vmatprep.subr.mxu0 0.0
    %761 = vmatpush1.msra.mxu0 0.0
    %762 = vmatprep.subr.mxu0 0.0
    %763 = vmatpush1.msra.mxu0 0.0
    %764 = vmatprep.subr.mxu0 0.0
    %765 = vmatpush1.msra.mxu0 0.0
    %766 = vmatprep.subr.mxu0 0.0
    %767 = vmatpush1.msra.mxu0 0.0
    %768 = vmatprep.subr.mxu0 0.0
    %769 = vmatpush1.msra.mxu0 0.0
    %770 = vmatprep.subr.mxu0 0.0
    %771 = vmatpush1.msra.mxu0 0.0
    %772 = vmatprep.subr.mxu0 0.0
    %773 = vmatpush1.msra.mxu0 0.0
    %774 = vmatprep.subr.mxu0 0.0
    %775 = vmatpush1.msra.mxu0 0.0
    %776 = vmatprep.subr.mxu0 0.0
    %777 = vmatpush1.msra.mxu0 0.0
    %778 = vmatprep.subr.mxu0 0.0
    %779 = vmatpush1.msra.mxu0 0.0
    %780 = vmatprep.subr.mxu0 0.0
    %781 = vmatpush1.msra.mxu0 0.0
    %782 = vmatprep.mubr.f32.mxu0 0.0
    %783 = vmatmul.mubr.f32.gmra.mrb[0].mxu0 %v693
    %v784 = vpop.f32.mrb[0].mxu0
    %v785 = vadd.f32 %v716, %v784
    %v786 = vpop.f32.mrb[0].mxu0
    %787 = vmatprep.mubr.f32.mxu0 0.0
    %788 = vmatmul.mubr.f32.gmra.mrb[0].mxu0 %v694
    %v789 = vpop.f32.mrb[0].mxu0
    %v790 = vadd.f32 %v716, %v789
    %v791 = vpop.f32.mrb[0].mxu0
    %792 = vdwg.mxu0
    %793 = vst [vmem:[#allocation10] sm:$0xff] %v785
    %794 = vst [vmem:[#allocation10 + $0x8] sm:$0xff] %v790
    // Predicated region
    $region54: #{node_classifier_forward.1} parent=1 // pred_check
      _
    $region55: #{node_classifier_forward.1} parent=1 // pred_check_branch
      %796 = sbr.rel (0) target = $region57
    $region56: #{node_classifier_forward.1} parent=1 // pred_region
      %s798 = ssub.s32 256, 256
      %799 = vsyncadd [#allocation4], %s798
      %s800 = sshll.u32 [#allocation10], 4
      %s801 = int_to_ptr.vmem [resolvable:$true] %s800
      %806 = dma.vmem_to_hbm [thread:$0]  %s801, 256, %s9, [#allocation4], 128, 128, 8
    $region57: #{node_classifier_forward.1} parent=1 // pred_fallthru
      _
    // Predicated region
    $region58: #{node_classifier_forward.1} parent=1 // pred_check
      _
    $region59: #{node_classifier_forward.1} parent=1 // pred_check_branch
      %808 = sbr.rel (0) target = $region61
    $region60: #{node_classifier_forward.1} parent=1 // pred_region
      %809 = dma.done [#allocation4], 256
    $region61: #{node_classifier_forward.1} parent=1 // pred_fallthru
      _
    %810 = vsyncpa [#allocation3], 1
    %811 = vsyncpa [#allocation6], 1
    %812 = vsyncpa [#allocation9], 1
    %813 = vsyncpa [#allocation4], 1

</llo_original>
